<compile_context>
chip_gen: v7x
topology: tpu7x:2x2x1
jax: 0.10.0
libtpu: 0.0.40
codegen_flags: <defaults>
</compile_context>

<pallas_src>
import math
import functools

import jax
import jax.numpy as jnp
from jax.experimental import pallas as pl
from jax.experimental.pallas import tpu as pltpu

# ---- hyper-parameters the original code pulls from `get_args()` --------------
NEGATIVE_SLOPE = 0.1   # args.negative_slope
SPARSITY = 0.5         # args.sparsity


# ------------------------------------------------------------------------------
# GetSubnet.forward (glue: top-k selection over |score|, plain JAX, done once)
# ------------------------------------------------------------------------------
def get_subnet_mask(scores_abs, k):
    """Bottom (1-k) fraction of |score| -> 0.0, top k fraction -> 1.0."""
    flat = scores_abs.reshape(-1)
    n = flat.size
    j = int((1.0 - k) * n)
    keep = n - j
    if keep <= 0:
        return jnp.zeros_like(scores_abs)
    # top_k instead of full argsort+scatter (cheaper; exact kept-count preserved).
    # Tie-breaking at the threshold may differ from torch's stable .sort().
    _, idx = jax.lax.top_k(flat, keep)
    mask = jnp.zeros((n,), scores_abs.dtype).at[idx].set(1.0)
    return mask.reshape(scores_abs.shape)


# ------------------------------------------------------------------------------
# Pallas kernel: batched GEMM (im2col conv) + bias + LeakyReLU
# ------------------------------------------------------------------------------
def wn_conv2d_gemm_kernel(p_ref, w_ref, b_ref, o_ref, *, b_tile, neg_slope):
    # p_ref: (B_TILE, K, M)    bf16 im2col patches, M = OH*OW on the lane axis
    # w_ref: (Cout, K)         bf16 pre-masked / pre-scaled weights
    # b_ref: (Cout, 1)         f32 bias (zeros when bias=False)
    # o_ref: (B_TILE, Cout, M) f32 output (channel-major, lane-dense spatial)
    w = w_ref[...]
    bias = b_ref[...]
    for b in range(b_tile):                                # small static unroll
        acc = jnp.dot(w, p_ref[b], preferred_element_type=jnp.float32)
        acc = acc + bias                                   # (Cout, M) + (Cout, 1)
        out = jnp.where(acc >= 0, acc, neg_slope * acc)    # LeakyReLU, f32 epilogue
        o_ref[b] = out.astype(o_ref.dtype)                 # natural 2-D store


# ------------------------------------------------------------------------------
# Batch-tile sizing: VMEM-aware, keep >= 2 grid steps when possible (v7x 2 TCs)
# ------------------------------------------------------------------------------
def _choose_b_tile(n, per_image_bytes, vmem_budget=16 * 1024 * 1024):
    bt_cap = max(1, vmem_budget // max(1, 2 * per_image_bytes))  # double-buffered
    divisors = [d for d in range(1, n + 1) if n % d == 0 and d <= bt_cap]
    if not divisors:
        return 1
    multi_step = [d for d in divisors if n // d >= 2]
    return max(multi_step) if multi_step else max(divisors)


# ------------------------------------------------------------------------------
# Wrapper: mask + im2col layout prep + pallas_call
# ------------------------------------------------------------------------------
def weight_norm_conv2d(x_nchw, weight_oihw, score_oihw, bias=None, *,
                       stride=1, padding=0, dilation=1, groups=1,
                       sparsity=SPARSITY, negative_slope=NEGATIVE_SLOPE):
    assert stride == 1 and dilation == 1 and groups == 1, \
        "kernel implements the module defaults (stride=1, dilation=1, groups=1)"
    # TODO(synk): general stride/dilation/groups not lowered in-kernel (module defaults only).

    N, Cin, H, W = x_nchw.shape
    Cout, Cin_g, KH, KW = weight_oihw.shape
    assert Cin_g == Cin

    # --- effective weight: mask + 1/sparsity, computed ONCE in the wrapper ---
    mask = get_subnet_mask(jnp.abs(score_oihw), sparsity)
    w_eff = weight_oihw * mask * (1.0 / sparsity)           # (Cout, Cin, KH, KW)
    w_mat = w_eff.reshape(Cout, Cin * KH * KW).astype(jnp.bfloat16)

    # --- pad + im2col (layout plumbing in XLA) ---
    x_p = x_nchw
    if padding:
        x_p = jnp.pad(x_p, ((0, 0), (0, 0), (padding, padding), (padding, padding)))
    HP, WP = x_p.shape[2], x_p.shape[3]
    OH, OW = HP - KH + 1, WP - KW + 1
    M = OH * OW
    Ktot = Cin * KH * KW

    taps = [x_p[:, :, kh:kh + OH, kw:kw + OW] for kh in range(KH) for kw in range(KW)]
    patches = jnp.stack(taps, axis=2)                       # (N, Cin, KH*KW, OH, OW)
    patches = patches.reshape(N, Ktot, M).astype(jnp.bfloat16)

    b = bias if bias is not None else jnp.zeros((Cout,), jnp.float32)
    b2 = b.reshape(Cout, 1).astype(jnp.float32)

    # --- tile sizing + explicit VMEM limit (re-derived, not hard-coded) ---
    per_image = Ktot * M * 2 + Cout * M * 4                  # bf16 patches + f32 out
    b_tile = _choose_b_tile(N, per_image)
    grid = (N // b_tile,)
    vmem_est = 2 * b_tile * per_image + 2 * (Cout * Ktot * 2 + Cout * 4)
    vmem_limit = int(min(48 * 2 ** 20, max(8 * 2 ** 20, 2 * vmem_est)))

    kern = functools.partial(wn_conv2d_gemm_kernel, b_tile=b_tile,
                             neg_slope=float(negative_slope))

    out_flat = pl.pallas_call(
        kern,
        out_shape=jax.ShapeDtypeStruct((N, Cout, M), jnp.float32),
        grid=grid,
        in_specs=[
            pl.BlockSpec((b_tile, Ktot, M), lambda i: (i, 0, 0)),
            pl.BlockSpec((Cout, Ktot), lambda i: (0, 0)),
            pl.BlockSpec((Cout, 1), lambda i: (0, 0)),
        ],
        out_specs=pl.BlockSpec((b_tile, Cout, M), lambda i: (i, 0, 0)),
        compiler_params=pltpu.CompilerParams(
            dimension_semantics=("parallel",),
            vmem_limit_bytes=vmem_limit),
    )(patches, w_mat, b2)

    # output already channel-major -> NCHW is a free reshape (no transpose).
    return out_flat.reshape(N, Cout, OH, OW).astype(x_nchw.dtype)


# ------------------------------------------------------------------------------
# Deterministic parameter init (mirrors _WeightNormLayer.initialize)
# ------------------------------------------------------------------------------
def init_params(key, in_features, out_features, kernel_size, negative_slope):
    gain = math.sqrt(2.0 / (1.0 + negative_slope ** 2))      # calculate_gain('leaky_relu')
    fan = out_features * 1                                   # next_ks = 1
    bound = gain / math.sqrt(fan)
    kw_, ks_ = jax.random.split(key)
    shape = (out_features, in_features, kernel_size, kernel_size)
    weight = bound * jax.random.normal(kw_, shape, jnp.float32)
    score = bound * jax.random.normal(ks_, shape, jnp.float32)
    return weight, score


if __name__ == "__main__":
    key = jax.random.PRNGKey(0)
    k_x, k_p = jax.random.split(key)

    N, Cin, H, W = 2, 4, 16, 16
    Cout, K = 8, 3

    x = jax.random.normal(k_x, (N, Cin, H, W), jnp.float32)      # NCHW, like PyTorch
    weight, score = init_params(k_p, Cin, Cout, K, NEGATIVE_SLOPE)

    out = weight_norm_conv2d(x, weight, score, bias=None,
                             stride=1, padding=0,
                             sparsity=SPARSITY, negative_slope=NEGATIVE_SLOPE)
    out = jax.block_until_ready(out)
    assert out.shape == (N, Cout, H - K + 1, W - K + 1), out.shape

    # strict check: reference conv with the SAME bf16 operand rounding, f32 accum
    mask = get_subnet_mask(jnp.abs(score), SPARSITY)
    w_eff = weight * mask / SPARSITY
    x_bf = x.astype(jnp.bfloat16).astype(jnp.float32)
    w_bf = w_eff.astype(jnp.bfloat16).astype(jnp.float32)
    ref = jax.lax.conv_general_dilated(
        x_bf, w_bf, window_strides=(1, 1), padding="VALID",
        dimension_numbers=("NCHW", "OIHW", "NCHW"))
    ref = jnp.where(ref >= 0, ref, NEGATIVE_SLOPE * ref)
    assert jnp.allclose(out, ref, atol=1e-3, rtol=1e-3), \
        float(jnp.max(jnp.abs(out - ref)))

    # loose check against full-f32 module semantics (only bf16 input rounding differs)
    ref32 = jax.lax.conv_general_dilated(
        x, w_eff, window_strides=(1, 1), padding="VALID",
        dimension_numbers=("NCHW", "OIHW", "NCHW"))
    ref32 = jnp.where(ref32 >= 0, ref32, NEGATIVE_SLOPE * ref32)
    assert jnp.allclose(out, ref32, atol=5e-2, rtol=5e-2)

    print("KERNEL_OK")
</pallas_src>

<mosaic_0001>
module attributes {stable_mosaic.version = 11 : i64} {
  func.func @wn_conv2d_gemm_kernel(%arg0: i32, %arg1: memref<1x36x196xbf16, #tpu.memory_space<vmem>>, %arg2: memref<8x36xbf16, #tpu.memory_space<vmem>>, %arg3: memref<8x1xf32, #tpu.memory_space<vmem>>, %arg4: memref<1x8x196xf32, #tpu.memory_space<vmem>>) attributes {dimension_semantics = [#tpu.dimension_semantics<parallel>], iteration_bounds = array<i64: 2>, scalar_prefetch = 0 : i64, scratch_operands = 0 : i64, tpu.core_type = #tpu.core_type<tc>, window_params = [{transform_indices = @transform_0, window_bounds = array<i64: 1, 36, 196>}, {pipeline_mode = #tpu.pipeline_mode<synchronous>, transform_indices = @transform_1, window_bounds = array<i64: 8, 36>}, {pipeline_mode = #tpu.pipeline_mode<synchronous>, transform_indices = @transform_2, window_bounds = array<i64: 8, 1>}, {transform_indices = @transform_3, window_bounds = array<i64: 1, 8, 196>}]} {
    %c0 = arith.constant 0 : index
    %c0_0 = arith.constant 0 : index
    %0 = vector.load %arg2[%c0, %c0_0] : memref<8x36xbf16, #tpu.memory_space<vmem>>, vector<8x36xbf16>
    %c0_1 = arith.constant 0 : index
    %c0_2 = arith.constant 0 : index
    %1 = vector.load %arg3[%c0_1, %c0_2] : memref<8x1xf32, #tpu.memory_space<vmem>>, vector<8x1xf32>
    %c0_3 = arith.constant 0 : index
    %c0_4 = arith.constant 0 : index
    %c0_5 = arith.constant 0 : index
    %2 = vector.load %arg1[%c0_3, %c0_4, %c0_5] : memref<1x36x196xbf16, #tpu.memory_space<vmem>>, vector<1x36x196xbf16>
    %3 = vector.shape_cast %2 : vector<1x36x196xbf16> to vector<36x196xbf16>
    %cst = arith.constant dense<0.000000e+00> : vector<8x196xf32>
    %4 = tpu.matmul %0, %3, %cst {dimension_numbers = #tpu.dot_dimension_numbers<[1], [0], [0], [1], [0, 0, 1, 1], [], []>} : vector<8x36xbf16>, vector<36x196xbf16>, vector<8x196xf32> -> vector<8x196xf32>
    %5 = vector.broadcast %1 : vector<8x1xf32> to vector<8x196xf32>
    %6 = arith.addf %4, %5 : vector<8x196xf32>
    %cst_6 = arith.constant 0.000000e+00 : f32
    %7 = vector.broadcast %cst_6 : f32 to vector<8x196xf32>
    %8 = arith.cmpf oge, %6, %7 : vector<8x196xf32>
    %cst_7 = arith.constant 1.000000e-01 : f32
    %9 = vector.broadcast %cst_7 : f32 to vector<8x196xf32>
    %10 = arith.mulf %9, %6 : vector<8x196xf32>
    %11 = arith.select %8, %6, %10 : vector<8x196xi1>, vector<8x196xf32>
    %c0_8 = arith.constant 0 : index
    %c0_9 = arith.constant 0 : index
    %c0_10 = arith.constant 0 : index
    %12 = vector.load %arg4[%c0_8, %c0_9, %c0_10] : memref<1x8x196xf32, #tpu.memory_space<vmem>>, vector<1x8x196xf32>
    %13 = vector.shape_cast %12 : vector<1x8x196xf32> to vector<8x196xf32>
    %14 = vector.shape_cast %11 : vector<8x196xf32> to vector<1x8x196xf32>
    tpu.vector_store %arg4[%c0_8, %c0_9, %c0_10], %14 {strides = array<i32>} : memref<1x8x196xf32, #tpu.memory_space<vmem>>, vector<1x8x196xf32>,
    return
  }
  func.func @transform_0(%arg0: i32) -> (i32, i32, i32) {
    %c0_i32 = arith.constant 0 : i32
    %c0_i32_0 = arith.constant 0 : i32
    %c0_i32_1 = arith.constant 0 : i32
    return %arg0, %c0_i32, %c0_i32_0 : i32, i32, i32
  }
  func.func @transform_1(%arg0: i32) -> (i32, i32) {
    %c0_i32 = arith.constant 0 : i32
    %c0_i32_0 = arith.constant 0 : i32
    %c0_i32_1 = arith.constant 0 : i32
    return %c0_i32, %c0_i32_0 : i32, i32
  }
  func.func @transform_2(%arg0: i32) -> (i32, i32) {
    %c0_i32 = arith.constant 0 : i32
    %c0_i32_0 = arith.constant 0 : i32
    %c0_i32_1 = arith.constant 0 : i32
    return %c0_i32, %c0_i32_0 : i32, i32
  }
  func.func @transform_3(%arg0: i32) -> (i32, i32, i32) {
    %c0_i32 = arith.constant 0 : i32
    %c0_i32_0 = arith.constant 0 : i32
    %c0_i32_1 = arith.constant 0 : i32
    return %arg0, %c0_i32, %c0_i32_0 : i32, i32, i32
  }
}

</mosaic_0001>

<llo_original>
// kernel: tpu_custom_call.1
$region0: #{tpu_custom_call.1}
  #allocation0 [shape = 'u32[]', space=smem, size = 0x4, offset = 0x4, fixed_abs, tag = 'smem constant byte address 0x4 - core index']
  #allocation1 [shape = 'u32[144,128]{1,0:T(1,128)}', space=vmem, size = 0x12000, scoped, tag = 'internal scratch']
  %s0 = inlined_call_operand.vmem [shape: bf16[2,36,196], index: 0, kind: input, shape index: {}]
  %s1 = inlined_call_operand.vmem [shape: bf16[8,36], index: 1, kind: input, shape index: {}]
  %s2 = inlined_call_operand.vmem [shape: f32[8,1], index: 2, kind: input, shape index: {}]
  %s3 = inlined_call_operand.hbm [shape: f32[2,8,196], index: 3, kind: output, shape index: {}]
  %s4 = sld [smem:[#allocation0]]
  $region45: #{tpu_custom_call.1} parent=0
    _
  %s6 = ssub.s32 1, %s4
  %s7 = scalar_select 0, %s6, %s4
  $region1: #{tpu_custom_call.1} parent=0
    #allocation2 [shape = 'u8[16384]{0}', space=vmem, size = 0x4000, scoped, tag = 'output window, operand 0']
    #allocation3 [shape = 's32[2]{0}', space=sflag, size = 0x8, scoped, tag = 'scoped memory for tpu_custom_call.1']
    %8 = vsyncpa [#allocation3], 0
    %s9 = scalar_lea.sflag [#allocation3], 1
    %10 = vsyncpa %s9, 0
    loop: start=0, step=1, limit=4
    $region2: #{tpu_custom_call.1} parent=1 // loop_pre_header
      _
    $region3: #{tpu_custom_call.1} parent=1 // loop_header
      %s12 = sphi 0, %s16
      %p13 = scmp.ge.s32.totalorder %s12, 4
      %s22 = sphi 0, %s24
      %s25 = sphi 0, %s22
      %s26 = sphi 0, %s25
      %s42 = sphi 0, %s26
      %s46 = sphi 0, %s46
      %s48 = sphi 0, %s46
      %s49 = sphi 0, %s48
      %s63 = sphi 0, %s49
      %s67 = sphi 0, %s67
      %s69 = sphi 0, %s67
      %s70 = sphi 0, %s69
      %s84 = sphi 0, %s70
      %s90 = sphi 0, %s92
      %s93 = sphi 0, %s90
      %s94 = sphi 0, %s93
      %s110 = sphi 0, %s94
    $region4: #{tpu_custom_call.1} parent=1 // loop_header_branch
      %15 = sbr.rel (%p13) target = $region8
    $region5: #{tpu_custom_call.1} parent=1 // loop_body
      %s17 = ssub.s32 %s12, 1
      %s18 = ssub.s32 %s12, 2
      %s19 = sadd.s32 %s12, 1
      %s20 = ssub.s32 %s12, %s19
      %p21 = scmp.eq.s32.totalorder %s20, 0
      %s23 = sadd.s32 %s22, 1
      %s24 = scalar_select %p21, %s22, %s23
      %p27 = pneg %p21
      %p28 = scmp.eq.s32.totalorder %s12, 1
      %p29 = por %p27, %p28
      %p30 = scmp.ne.s32.totalorder %s22, %s25
      %p31 = scmp.eq.s32.totalorder %s12, 0
      %p32 = por %p30, %p31
      %p33 = scmp.ne.s32.totalorder %s22, %s25
      %p34 = scmp.eq.s32.totalorder %s17, 1
      %p35 = por %p33, %p34
      %p36 = scmp.ne.s32.totalorder %s25, %s26
      %p37 = scmp.eq.s32.totalorder %s17, 0
      %p38 = por %p36, %p37
      %p39 = scmp.ne.s32.totalorder %s25, %s26
      %p40 = scmp.eq.s32.totalorder %s18, 1
      %p41 = por %p39, %p40
      %p43 = scmp.ne.s32.totalorder %s26, %s42
      %p44 = scmp.eq.s32.totalorder %s18, 0
      %p45 = por %p43, %p44
      %s47 = sadd.s32 %s46, 1
      %p50 = scmp.eq.s32.totalorder %s12, 1
      %p51 = scmp.ne.s32.totalorder %s46, %s48
      %p52 = scmp.eq.s32.totalorder %s12, 0
      %p53 = por %p51, %p52
      %p54 = scmp.ne.s32.totalorder %s46, %s48
      %p55 = scmp.eq.s32.totalorder %s17, 1
      %p56 = por %p54, %p55
      %p57 = scmp.ne.s32.totalorder %s48, %s49
      %p58 = scmp.eq.s32.totalorder %s17, 0
      %p59 = por %p57, %p58
      %p60 = scmp.ne.s32.totalorder %s48, %s49
      %p61 = scmp.eq.s32.totalorder %s18, 1
      %p62 = por %p60, %p61
      %p64 = scmp.ne.s32.totalorder %s49, %s63
      %p65 = scmp.eq.s32.totalorder %s18, 0
      %p66 = por %p64, %p65
      %s68 = sadd.s32 %s67, 1
      %p71 = scmp.eq.s32.totalorder %s12, 1
      %p72 = scmp.ne.s32.totalorder %s67, %s69
      %p73 = scmp.eq.s32.totalorder %s12, 0
      %p74 = por %p72, %p73
      %p75 = scmp.ne.s32.totalorder %s67, %s69
      %p76 = scmp.eq.s32.totalorder %s17, 1
      %p77 = por %p75, %p76
      %p78 = scmp.ne.s32.totalorder %s69, %s70
      %p79 = scmp.eq.s32.totalorder %s17, 0
      %p80 = por %p78, %p79
      %p81 = scmp.ne.s32.totalorder %s69, %s70
      %p82 = scmp.eq.s32.totalorder %s18, 1
      %p83 = por %p81, %p82
      %p85 = scmp.ne.s32.totalorder %s70, %s84
      %p86 = scmp.eq.s32.totalorder %s18, 0
      %p87 = por %p85, %p86
      %s88 = ssub.s32 %s12, %s19
      %p89 = scmp.eq.s32.totalorder %s88, 0
      %s91 = sadd.s32 %s90, 1
      %s92 = scalar_select %p89, %s90, %s91
      %p95 = pneg %p89
      %p96 = scmp.eq.s32.totalorder %s12, 1
      %p97 = por %p95, %p96
      %p98 = scmp.ne.s32.totalorder %s90, %s93
      %p99 = scmp.eq.s32.totalorder %s12, 0
      %p100 = por %p98, %p99
      %p101 = scmp.ne.s32.totalorder %s90, %s93
      %p102 = scmp.eq.s32.totalorder %s17, 1
      %p103 = por %p101, %p102
      %p104 = scmp.ne.s32.totalorder %s93, %s94
      %p105 = scmp.eq.s32.totalorder %s17, 0
      %p106 = por %p104, %p105
      %p107 = scmp.ne.s32.totalorder %s93, %s94
      %p108 = scmp.eq.s32.totalorder %s18, 1
      %p109 = por %p107, %p108
      %p111 = scmp.ne.s32.totalorder %s94, %s110
      %p112 = scmp.eq.s32.totalorder %s18, 0
      %p113 = por %p111, %p112
      %p114 = scmp.le.s32.totalorder 1, %s12
      %p115 = scmp.lt.s32.totalorder %s12, 3
      %p116 = pnand %p114, %p115
      %p117 = pneg %p116
      // Predicated region
      $region9: #{tpu_custom_call.1} parent=5 // pred_check
        _
      $region10: #{tpu_custom_call.1} parent=5 // pred_check_branch
        %119 = sbr.rel (%p116) target = $region12
      $region11: #{tpu_custom_call.1} parent=5 // pred_region
        %s120 = ssub.s32 %s12, 1
        // Predicated region
        $region13: #{tpu_custom_call.1} parent=11 // pred_check
          %p121 = pneg %p59
        $region14: #{tpu_custom_call.1} parent=11 // pred_check_branch
          %123 = sbr.rel (%p121) target = $region16
        $region15: #{tpu_custom_call.1} parent=11 // pred_region
          _
        $region16: #{tpu_custom_call.1} parent=11 // pred_fallthru
          _
        // Predicated region
        $region17: #{tpu_custom_call.1} parent=11 // pred_check
          %p124 = pneg %p80
        $region18: #{tpu_custom_call.1} parent=11 // pred_check_branch
          %126 = sbr.rel (%p124) target = $region20
        $region19: #{tpu_custom_call.1} parent=11 // pred_region
          _
        $region20: #{tpu_custom_call.1} parent=11 // pred_fallthru
          _
      $region12: #{tpu_custom_call.1} parent=5 // pred_fallthru
        _
      %p127 = scmp.lt.s32.totalorder %s12, 2
      // Predicated region
      $region21: #{tpu_custom_call.1} parent=5 // pred_check
        %p128 = pneg %p127
      $region22: #{tpu_custom_call.1} parent=5 // pred_check_branch
        %130 = sbr.rel (%p128) target = $region24
      $region23: #{tpu_custom_call.1} parent=5 // pred_region
        // Predicated region
        $region25: #{tpu_custom_call.1} parent=23 // pred_check
          %p131 = pneg %p32
        $region26: #{tpu_custom_call.1} parent=23 // pred_check_branch
          %133 = sbr.rel (%p131) target = $region28
        $region27: #{tpu_custom_call.1} parent=23 // pred_region
          %p134 = scmp.lt.s32.totalorder %s12, 1
          %s135 = scalar_select %p134, %s12, 1
          %s136 = smul.addr %s135, 10
          %s137 = smul.addr %s136, 4
          %s138 = scalar_lea.vmem %s0, %s137
        $region28: #{tpu_custom_call.1} parent=23 // pred_fallthru
          _
      $region24: #{tpu_custom_call.1} parent=5 // pred_fallthru
        _
      %p139 = scmp.le.s32.totalorder 1, %s12
      %p140 = scmp.lt.s32.totalorder %s12, 3
      %p141 = pnand %p139, %p140
      %p142 = pneg %p141
      // Predicated region
      $region29: #{tpu_custom_call.1} parent=5 // pred_check
        _
      $region30: #{tpu_custom_call.1} parent=5 // pred_check_branch
        %144 = sbr.rel (%p141) target = $region32
      $region31: #{tpu_custom_call.1} parent=5 // pred_region
        %s145 = ssub.s32 %s12, 1
        %p146 = scmp.lt.s32.totalorder %s17, 1
        %s147 = scalar_select %p146, %s17, 1
        %s148 = smul.addr %s147, 10
        %s149 = smul.addr %s148, 4
        %s150 = scalar_lea.vmem %s0, %s149
        %p151 = pneg %p38
        %p152 = pneg %p35
        %p153 = pneg %p59
        %p154 = pneg %p56
        %p155 = pneg %p80
        %p156 = pneg %p77
        %p157 = pneg %p106
        %p158 = pneg %p103
        %s159 = sand.u32 %s93, 1
        %s160 = scalar_lea.sflag [#allocation3], %s159
        %s161 = sand.u32 %s93, 1
        %s162 = smul.addr %s161, 16
        %s163 = scalar_lea.vmem [#allocation2], %s162
        %p164 = scmp.lt.s32.totalorder %s17, 1
        %s165 = scalar_select %p164, %s17, 1
        %s166 = smul.addr %s165, 10
        %s167 = smul.addr %s166, 4
        %s168 = scalar_lea.vmem %s0, %s167
        %v170 = vld [vmem:[%s1] sm:$0xf]
        %v171 = vld [vmem:[%s2] sm:$0xff]
        %v172 = vld [vmem:[%s168] sm:$0xff]
        %v173 = vld [vmem:[%s168 + $0x8] sm:$0xff]
        %v174 = vld [vmem:[%s168 + $0x10] sm:$0xff]
        %v175 = vld [vmem:[%s168 + $0x18] sm:$0xff]
        %v176 = vld [vmem:[%s168 + $0x20] sm:$0x33]
        %178 = vset.pattern.permute.xlu0 0
        %179 = vperm.xlu0 %178, %v171
        %v180 = vpop.permute.xlu0 %179
        %v187 = vunpack.c.l.b16 %v172
        %v188 = vunpack.c.h.b16 %v172
        %v189 = vunpack.c.l.b16 %v173
        %v190 = vunpack.c.h.b16 %v173
        %v191 = vunpack.c.l.b16 %v174
        %v192 = vunpack.c.h.b16 %v174
        %v193 = vunpack.c.l.b16 %v175
        %v194 = vunpack.c.h.b16 %v175
        %v195 = vunpack.c.l.b16 %v176
        %v196 = vunpack.c.h.b16 %v176
        %v197 = vpack.c.b16 %v189, %v187
        %v198 = vpack.c.b16 %v190, %v188
        %v199 = vpack.c.b16 %v193, %v191
        %v200 = vpack.c.b16 %v194, %v192
        %v201 = vpack.c.b16 %v195, %v195
        %v202 = vpack.c.b16 %v196, %v196
        %vm207 = vcmask 293888
        %v209 = vsel %vm207, %v170, 0
        %vm211 = vcmask 1041408
        %v213 = vsel %vm211, %v201, 0
        %v216 = vsel %vm211, %v202, 0
        %218 = vmatprep.subr.bf16.mxu0 %v198
        %219 = vmatpush1.bf16.msra.mxu0 %v197
        %220 = vmatprep.subr.bf16.mxu0 %v200
        %221 = vmatpush1.bf16.msra.mxu0 %v199
        %222 = vmatprep.subr.bf16.mxu0 %v216
        %223 = vmatpush1.bf16.msra.mxu0 %v213
        %224 = vmatprep.subr.bf16.mxu0 0
        %225 = vmatpush1.bf16.msra.mxu0 0
        %226 = vmatprep.subr.bf16.mxu0 0
        %227 = vmatpush1.bf16.msra.mxu0 0
        %228 = vmatprep.subr.bf16.mxu0 0
        %229 = vmatpush1.bf16.msra.mxu0 0
        %230 = vmatprep.subr.bf16.mxu0 0
        %231 = vmatpush1.bf16.msra.mxu0 0
        %232 = vmatprep.subr.bf16.mxu0 0
        %233 = vmatpush1.bf16.msra.mxu0 0
        %234 = vmatprep.subr.bf16.mxu0 0
        %235 = vmatpush1.bf16.msra.mxu0 0
        %236 = vmatprep.subr.bf16.mxu0 0
        %237 = vmatpush1.bf16.msra.mxu0 0
        %238 = vmatprep.subr.bf16.mxu0 0
        %239 = vmatpush1.bf16.msra.mxu0 0
        %240 = vmatprep.subr.bf16.mxu0 0
        %241 = vmatpush1.bf16.msra.mxu0 0
        %242 = vmatprep.subr.bf16.mxu0 0
        %243 = vmatpush1.bf16.msra.mxu0 0
        %244 = vmatprep.subr.bf16.mxu0 0
        %245 = vmatpush1.bf16.msra.mxu0 0
        %246 = vmatprep.subr.bf16.mxu0 0
        %247 = vmatpush1.bf16.msra.mxu0 0
        %248 = vmatprep.subr.bf16.mxu0 0
        %249 = vmatpush1.bf16.msra.mxu0 0
        %250 = vmatprep.mubr.bf16.mxu0 0
        %251 = vmatmul.mubr.bf16.gmra.mrb[0].mxu0 %v209
        %v252 = vpop.f32.mrb[0].mxu0
        %v253 = vadd.f32 %v180, %v252
        %v254 = vpop.f32.mrb[0].mxu0
        %v255 = vadd.f32 %v180, %v254
        %v256 = vpop.f32.mrb[0].mxu0
        %v257 = vpop.f32.mrb[0].mxu0
        %258 = vdwg.mxu0
        %vm259 = vcmp.ge.f32.partialorder %v253, 0.0
        %vm260 = vcmp.ge.f32.partialorder %v255, 0.0
        %v261 = vmul.f32 %v253, 0.1
        %v262 = vmul.f32 %v255, 0.1
        %v263 = vsel %vm259, %v253, %v261
        %v264 = vsel %vm260, %v255, %v262
        %265 = vst [vmem:[%s163] sm:$0xff] %v263
        %vm266 = vcmask 556032
        %267 = vst.msk [vmem:[%s163 + $0x8] sm:$0xff] %vm266, %v264
        %s268 = sand.u32 %s93, 1
        %s269 = scalar_lea.sflag [#allocation3], %s268
        %s270 = sand.u32 %s93, 1
        %s271 = smul.addr %s270, 16
        %s272 = scalar_lea.vmem [#allocation2], %s271
        // Predicated region
        $region33: #{tpu_custom_call.1} parent=31 // pred_check
          %p273 = pneg %p103
        $region34: #{tpu_custom_call.1} parent=31 // pred_check_branch
          %275 = sbr.rel (%p273) target = $region36
        $region35: #{tpu_custom_call.1} parent=31 // pred_region
          %s277 = ssub.s32 256, 256
          %278 = vsyncadd %s269, %s277
          %s279 = smul.addr %s17, 2
          %s280 = smul.addr %s279, 128
          %s281 = scalar_lea.hbm %s3, %s280
          %s283 = sshll.u32 %s272, 4
          %s284 = int_to_ptr.vmem [resolvable:$true] %s283
          %286 = dma.vmem_to_hbm [thread:$0]  %s284, 256, %s281, %s269
        $region36: #{tpu_custom_call.1} parent=31 // pred_fallthru
          _
      $region32: #{tpu_custom_call.1} parent=5 // pred_fallthru
        _
      %p287 = scmp.le.s32.totalorder 2, %s12
      // Predicated region
      $region37: #{tpu_custom_call.1} parent=5 // pred_check
        %p288 = pneg %p287
      $region38: #{tpu_custom_call.1} parent=5 // pred_check_branch
        %290 = sbr.rel (%p288) target = $region40
      $region39: #{tpu_custom_call.1} parent=5 // pred_region
        %s291 = ssub.s32 %s12, 2
        // Predicated region
        $region41: #{tpu_custom_call.1} parent=39 // pred_check
          %p292 = pneg %p109
        $region42: #{tpu_custom_call.1} parent=39 // pred_check_branch
          %294 = sbr.rel (%p292) target = $region44
        $region43: #{tpu_custom_call.1} parent=39 // pred_region
          %s295 = sand.u32 %s94, 1
          %s296 = scalar_lea.sflag [#allocation3], %s295
          %s297 = sand.u32 %s94, 1
          %s298 = smul.addr %s297, 16
          %s299 = scalar_lea.vmem [#allocation2], %s298
          %300 = dma.done %s296, 256
        $region44: #{tpu_custom_call.1} parent=39 // pred_fallthru
          _
      $region40: #{tpu_custom_call.1} parent=5 // pred_fallthru
        _
    $region6: #{tpu_custom_call.1} parent=1 // loop_footer
      %s16 = sadd.s32 1, %s12
    $region7: #{tpu_custom_call.1} parent=1 // loop_footer_branch
      %11 = sbr.rel target = $region3
    $region8: #{tpu_custom_call.1} parent=1 // loop_exit
      _
    %301 = vsyncpa [#allocation3], 1
    %s302 = scalar_lea.sflag [#allocation3], 1
    %303 = vsyncpa %s302, 1

</llo_original>
